<compile_context>
chip_gen: v5e
topology: v5e:2x2
jax: 0.10.0
libtpu: 0.0.40
codegen_flags: <defaults>
</compile_context>

<pallas_src>
import functools

import jax
import jax.numpy as jnp
import numpy as np
from jax import lax
from jax.experimental import pallas as pl
from jax.experimental.pallas import tpu as pltpu

_LANE = 128
_SUBLANE = 8
_MAX_BLOCK_C = 2048          # class-tile width (lanes) for large C
_MAX_BLOCK_ROWS = 32768      # hard cap on the row tile
_VMEM_HEADROOM = 24 << 20    # left free for output buffers / Mosaic scratch
_VMEM_LIMIT_MARGIN = 12 << 20


def _label_smoothing_kernel(pred_ref, tgt_ref, out_ref, m_sc, l_sc, acc_sc, *,
                            confidence, smooth_val, tdist_sum, block_rows,
                            block_c, n_rows, n_cols, mask_cols):
    i = pl.program_id(0)              # row-block index   ("parallel")
    k = pl.program_id(1)              # class-block index ("arbitrary")
    nk = pl.num_programs(1)

    @pl.when(k == 0)
    def _init():
        m_sc[...] = jnp.full_like(m_sc, -jnp.inf)
        l_sc[...] = jnp.zeros_like(l_sc)
        acc_sc[...] = jnp.zeros_like(acc_sc)

    x = pred_ref[...].astype(jnp.float32)                      # (TN, TC)
    tgt = tgt_ref[...]                                          # (TN, 1)
    col = k * block_c + lax.broadcasted_iota(jnp.int32, x.shape, 1)

    if mask_cols:
        # Last class block is partial: out-of-range columns are undefined.
        col_valid = col < n_cols
        x_for_max = jnp.where(col_valid, x, -jnp.inf)
        x_for_sum = jnp.where(col_valid, x, 0.0)
    else:
        x_for_max = x
        x_for_sum = x

    # --- Online log-sum-exp over class blocks ---
    blk_max = jnp.max(x_for_max, axis=-1, keepdims=True)        # (TN, 1)
    m_new = jnp.maximum(m_sc[...], blk_max)
    alpha = jnp.exp(m_sc[...] - m_new)
    l_sc[...] = alpha * l_sc[...] + jnp.sum(
        jnp.exp(x_for_max - m_new), axis=-1, keepdims=True)
    m_sc[...] = m_new

    # --- Fused weighted row reduction:  sum_c true_dist_c * x_c ---
    # true_dist_c = smooth_val (c != target), confidence (c == target).
    acc_sc[...] += jnp.sum(
        smooth_val * x_for_sum
        + (confidence - smooth_val) * jnp.where(col == tgt, x, 0.0),
        axis=-1, keepdims=True)

    @pl.when(k == nk - 1)
    def _finalize():
        lse = m_sc[...] + jnp.log(l_sc[...])                     # (TN, 1)
        # loss_row = sum(true_dist)*LSE - sum_c(true_dist_c * x_c)
        row_loss = tdist_sum * lse - acc_sc[...]                 # (TN, 1)

        # Discard padded tail rows.  Must stay a SELECT: padded rows hold
        # undefined data whose log-softmax can be NaN/Inf (0 * NaN = NaN).
        row_idx = i * block_rows + lax.broadcasted_iota(
            jnp.int32, (block_rows, 1), 0)
        row_loss = jnp.where(row_idx < n_rows, row_loss, 0.0)
        partial = jnp.sum(row_loss)                              # scalar

        # Single unmasked lane-dense store of the block partial at [0, 0].
        ri = lax.broadcasted_iota(jnp.int32, (_SUBLANE, _LANE), 0)
        ci = lax.broadcasted_iota(jnp.int32, (_SUBLANE, _LANE), 1)
        out_ref[...] = jnp.where((ri == 0) & (ci == 0), partial, 0.0)


def _round_up(x, m):
    return -(-x // m) * m


def _vmem_capacity_bytes():
    try:
        return int(pltpu.get_tpu_info().vmem_capacity_bytes)
    except Exception:
        return 64 << 20   # conservative (v7x-sized) fallback


def _per_row_vmem_bytes(block_c, itemsize):
    """Estimated VMEM bytes per row tile (lane-padded)."""
    c_pad = max(_round_up(block_c, _LANE), _LANE)
    pred_b = 2 * c_pad * itemsize          # double-buffered pred tile
    tmp_b = 6 * c_pad * 4                  # f32 upcast / iota / exp temporaries
    scratch_b = 3 * _LANE * 4              # m / l / acc columns (lane-padded)
    tgt_b = 2 * _LANE * 4                  # double-buffered target column
    return pred_b + tmp_b + scratch_b + tgt_b


def _choose_block_rows(n, block_c, itemsize, vmem_cap):
    """Largest row tile whose working set fits (capacity - headroom)."""
    budget = max(vmem_cap - _VMEM_HEADROOM, 8 << 20)
    per_row = _per_row_vmem_bytes(block_c, itemsize)
    rows = budget // per_row
    rows = min(rows, _MAX_BLOCK_ROWS, max(_round_up(n, _SUBLANE), _SUBLANE))
    rows = (rows // _SUBLANE) * _SUBLANE
    return max(int(rows), _SUBLANE)


def label_smoothing_loss(pred, target, *, num_classes, smoothing=0.1,
                         block_rows=None, block_c=None):
    """pred: (N, C) float (f32 or bf16), target: (N,) int. Scalar mean loss."""
    n, c = pred.shape
    assert c == num_classes
    if num_classes < 2:
        raise ValueError("num_classes must be >= 2 for label smoothing")
    confidence = 1.0 - smoothing
    smooth_val = smoothing / (num_classes - 1)
    tdist_sum = smooth_val * (num_classes - 1) + confidence   # sum of true_dist

    itemsize = jnp.dtype(pred.dtype).itemsize

    if block_c is None:
        block_c = c if c <= _MAX_BLOCK_C else _MAX_BLOCK_C
    num_cblocks = pl.cdiv(c, block_c)
    mask_cols = (num_cblocks * block_c != c)

    vmem_cap = _vmem_capacity_bytes()
    if block_rows is None:
        block_rows = _choose_block_rows(n, block_c, itemsize, vmem_cap)
    num_rblocks = pl.cdiv(n, block_rows)
    padded_n = num_rblocks * block_rows

    tgt = target.astype(jnp.int32).reshape(n, 1)
    if padded_n != n:
        tgt = jnp.pad(tgt, ((0, padded_n - n), (0, 0)))

    kernel = functools.partial(
        _label_smoothing_kernel,
        confidence=confidence,
        smooth_val=smooth_val,
        tdist_sum=tdist_sum,
        block_rows=block_rows,
        block_c=block_c,
        n_rows=n,
        n_cols=c,
        mask_cols=mask_cols,
    )

    # Scoped-VMEM request: computed footprint + margin, clamped to capacity
    # (no blanket 32 MiB floor; block_rows already respects the headroom).
    footprint = (block_rows * _per_row_vmem_bytes(block_c, itemsize)
                 + 2 * _SUBLANE * _LANE * 4)
    vmem_limit = int(min(vmem_cap, footprint + _VMEM_LIMIT_MARGIN))

    partials = pl.pallas_call(
        kernel,
        out_shape=jax.ShapeDtypeStruct((num_rblocks * _SUBLANE, _LANE),
                                       jnp.float32),
        grid_spec=pltpu.PrefetchScalarGridSpec(
            num_scalar_prefetch=0,
            grid=(num_rblocks, num_cblocks),
            in_specs=[
                pl.BlockSpec((block_rows, block_c), lambda i, k: (i, k)),
                pl.BlockSpec((block_rows, 1), lambda i, k: (i, 0)),
            ],
            out_specs=pl.BlockSpec((_SUBLANE, _LANE), lambda i, k: (i, 0)),
            scratch_shapes=[pltpu.VMEM((block_rows, 1), jnp.float32)] * 3,
        ),
        compiler_params=pltpu.CompilerParams(
            dimension_semantics=("parallel", "arbitrary"),
            vmem_limit_bytes=vmem_limit,
        ),
    )(pred, tgt)

    # All non-[0, 0] entries of every output block are exactly zero, so a full
    # sum equals the sum of the block partials.
    return jnp.sum(partials) / jnp.float32(n)


def _reference_loss(pred, target, num_classes, smoothing=0.1):
    confidence = 1.0 - smoothing
    log_probs = jax.nn.log_softmax(pred.astype(jnp.float32), axis=-1)
    true_dist = jnp.full_like(log_probs, smoothing / (num_classes - 1))
    true_dist = true_dist.at[jnp.arange(pred.shape[0]), target].set(confidence)
    return jnp.mean(jnp.sum(-true_dist * log_probs, axis=-1))


if __name__ == "__main__":
    key = jax.random.PRNGKey(0)
    k1, k2, k3, k4 = jax.random.split(key, 4)
    smoothing = 0.1

    # Test 1: small shape, N not a multiple of the row tile (tail masking),
    # single class block (C == block_c).
    N, C = 60, 32
    pred = jax.random.normal(k1, (N, C), dtype=jnp.float32)
    target = jax.random.randint(k2, (N,), 0, C, dtype=jnp.int32)
    loss = jax.block_until_ready(
        label_smoothing_loss(pred, target, num_classes=C, smoothing=smoothing))
    ref = jax.block_until_ready(_reference_loss(pred, target, C, smoothing))
    np.testing.assert_allclose(np.asarray(loss), np.asarray(ref),
                               rtol=1e-5, atol=1e-5)

    # Test 2: bf16 input path (half the HBM bytes; kernel upcasts to f32).
    pred_bf16 = pred.astype(jnp.bfloat16)
    loss_bf16 = jax.block_until_ready(
        label_smoothing_loss(pred_bf16, target, num_classes=C,
                             smoothing=smoothing))
    ref_bf16 = jax.block_until_ready(
        _reference_loss(pred_bf16, target, C, smoothing))
    np.testing.assert_allclose(np.asarray(loss_bf16), np.asarray(ref_bf16),
                               rtol=1e-4, atol=1e-4)

    # Test 3: forced class-axis tiling with a partial last class block
    # (exercises the streaming log-sum-exp + column masking path).
    N2, C2 = 24, 160
    pred2 = jax.random.normal(k3, (N2, C2), dtype=jnp.float32)
    target2 = jax.random.randint(k4, (N2,), 0, C2, dtype=jnp.int32)
    loss2 = jax.block_until_ready(
        label_smoothing_loss(pred2, target2, num_classes=C2,
                             smoothing=smoothing, block_c=128))
    ref2 = jax.block_until_ready(_reference_loss(pred2, target2, C2, smoothing))
    np.testing.assert_allclose(np.asarray(loss2), np.asarray(ref2),
                               rtol=1e-5, atol=1e-5)

    print("KERNEL_OK")
</pallas_src>

<mosaic_0001>
module attributes {stable_mosaic.version = 11 : i64} {
  func.func @_label_smoothing_kernel(%arg0: i32, %arg1: i32, %arg2: memref<64x32xf32, #tpu.memory_space<vmem>>, %arg3: memref<64x1xi32, #tpu.memory_space<vmem>>, %arg4: memref<8x128xf32, #tpu.memory_space<vmem>>, %arg5: memref<64x1xf32, #tpu.memory_space<vmem>>, %arg6: memref<64x1xf32, #tpu.memory_space<vmem>>, %arg7: memref<64x1xf32, #tpu.memory_space<vmem>>) attributes {dimension_semantics = [#tpu.dimension_semantics<parallel>, #tpu.dimension_semantics<arbitrary>], iteration_bounds = array<i64: 1, 1>, scalar_prefetch = 0 : i64, scratch_operands = 3 : i64, tpu.core_type = #tpu.core_type<tc>, window_params = [{transform_indices = @transform_0, window_bounds = array<i64: 64, 32>}, {transform_indices = @transform_1, window_bounds = array<i64: 64, 1>}, {transform_indices = @transform_2, window_bounds = array<i64: 8, 128>}]} {
    %c0_i32 = arith.constant 0 : i32
    %0 = arith.cmpi eq, %arg1, %c0_i32 : i32
    %1 = arith.extui %0 : i1 to i32
    %c0_i32_0 = arith.constant 0 : i32
    %2 = arith.cmpi ne, %1, %c0_i32_0 : i32
    scf.if %2 {
      %cst_25 = arith.constant 0xFF800000 : f32
      %43 = vector.broadcast %cst_25 : f32 to vector<64x1xf32>
      %c0_26 = arith.constant 0 : index
      %c0_27 = arith.constant 0 : index
      %44 = vector.load %arg5[%c0_26, %c0_27] : memref<64x1xf32, #tpu.memory_space<vmem>>, vector<64x1xf32>
      tpu.vector_store %arg5[%c0_26, %c0_27], %43 {strides = array<i32>} : memref<64x1xf32, #tpu.memory_space<vmem>>, vector<64x1xf32>,
      %cst_28 = arith.constant 0.000000e+00 : f32
      %45 = vector.broadcast %cst_28 : f32 to vector<64x1xf32>
      %c0_29 = arith.constant 0 : index
      %c0_30 = arith.constant 0 : index
      %46 = vector.load %arg6[%c0_29, %c0_30] : memref<64x1xf32, #tpu.memory_space<vmem>>, vector<64x1xf32>
      tpu.vector_store %arg6[%c0_29, %c0_30], %45 {strides = array<i32>} : memref<64x1xf32, #tpu.memory_space<vmem>>, vector<64x1xf32>,
      %cst_31 = arith.constant 0.000000e+00 : f32
      %47 = vector.broadcast %cst_31 : f32 to vector<64x1xf32>
      %c0_32 = arith.constant 0 : index
      %c0_33 = arith.constant 0 : index
      %48 = vector.load %arg7[%c0_32, %c0_33] : memref<64x1xf32, #tpu.memory_space<vmem>>, vector<64x1xf32>
      tpu.vector_store %arg7[%c0_32, %c0_33], %47 {strides = array<i32>} : memref<64x1xf32, #tpu.memory_space<vmem>>, vector<64x1xf32>,
    } else {
    }
    %c0 = arith.constant 0 : index
    %c0_1 = arith.constant 0 : index
    %3 = vector.load %arg2[%c0, %c0_1] : memref<64x32xf32, #tpu.memory_space<vmem>>, vector<64x32xf32>
    %c0_2 = arith.constant 0 : index
    %c0_3 = arith.constant 0 : index
    %4 = vector.load %arg3[%c0_2, %c0_3] : memref<64x1xi32, #tpu.memory_space<vmem>>, vector<64x1xi32>
    %c32_i32 = arith.constant 32 : i32
    %5 = arith.muli %arg1, %c32_i32 : i32
    %6 = tpu.iota {dimensions = array<i32: 1>} : vector<64x32xi32>
    %7 = vector.broadcast %5 : i32 to vector<64x32xi32>
    %8 = arith.addi %7, %6 : vector<64x32xi32>
    %cst = arith.constant dense<0xFF800000> : vector<64xf32>
    %9 = vector.multi_reduction <maximumf>, %3, %cst [1] : vector<64x32xf32> to vector<64xf32>
    %10 = vector.shape_cast %9 : vector<64xf32> to vector<64x1xf32>
    %c0_4 = arith.constant 0 : index
    %c0_5 = arith.constant 0 : index
    %11 = vector.load %arg5[%c0_4, %c0_5] : memref<64x1xf32, #tpu.memory_space<vmem>>, vector<64x1xf32>
    %12 = arith.maximumf %11, %10 : vector<64x1xf32>
    %c0_6 = arith.constant 0 : index
    %c0_7 = arith.constant 0 : index
    %13 = vector.load %arg5[%c0_6, %c0_7] : memref<64x1xf32, #tpu.memory_space<vmem>>, vector<64x1xf32>
    %14 = arith.subf %13, %12 : vector<64x1xf32>
    %15 = math.exp %14 : vector<64x1xf32>
    %c0_8 = arith.constant 0 : index
    %c0_9 = arith.constant 0 : index
    %16 = vector.load %arg6[%c0_8, %c0_9] : memref<64x1xf32, #tpu.memory_space<vmem>>, vector<64x1xf32>
    %17 = arith.mulf %15, %16 : vector<64x1xf32>
    %18 = vector.broadcast %12 : vector<64x1xf32> to vector<64x32xf32>
    %19 = arith.subf %3, %18 : vector<64x32xf32>
    %20 = math.exp %19 : vector<64x32xf32>
    %cst_10 = arith.constant dense<0.000000e+00> : vector<64xf32>
    %21 = vector.multi_reduction <add>, %20, %cst_10 [1] : vector<64x32xf32> to vector<64xf32>
    %22 = vector.shape_cast %21 : vector<64xf32> to vector<64x1xf32>
    %23 = arith.addf %17, %22 : vector<64x1xf32>
    %c0_11 = arith.constant 0 : index
    %c0_12 = arith.constant 0 : index
    %24 = vector.load %arg6[%c0_11, %c0_12] : memref<64x1xf32, #tpu.memory_space<vmem>>, vector<64x1xf32>
    tpu.vector_store %arg6[%c0_11, %c0_12], %23 {strides = array<i32>} : memref<64x1xf32, #tpu.memory_space<vmem>>, vector<64x1xf32>,
    %c0_13 = arith.constant 0 : index
    %c0_14 = arith.constant 0 : index
    %25 = vector.load %arg5[%c0_13, %c0_14] : memref<64x1xf32, #tpu.memory_space<vmem>>, vector<64x1xf32>
    tpu.vector_store %arg5[%c0_13, %c0_14], %12 {strides = array<i32>} : memref<64x1xf32, #tpu.memory_space<vmem>>, vector<64x1xf32>,
    %c0_15 = arith.constant 0 : index
    %c0_16 = arith.constant 0 : index
    %26 = vector.load %arg7[%c0_15, %c0_16] : memref<64x1xf32, #tpu.memory_space<vmem>>, vector<64x1xf32>
    %cst_17 = arith.constant 0.0032258064 : f32
    %27 = vector.broadcast %cst_17 : f32 to vector<64x32xf32>
    %28 = arith.mulf %27, %3 : vector<64x32xf32>
    %29 = vector.broadcast %4 : vector<64x1xi32> to vector<64x32xi32>
    %30 = arith.cmpi eq, %8, %29 : vector<64x32xi32>
    %cst_18 = arith.constant 0.000000e+00 : f32
    %31 = vector.broadcast %cst_18 : f32 to vector<64x32xf32>
    %32 = arith.select %30, %3, %31 : vector<64x32xi1>, vector<64x32xf32>
    %cst_19 = arith.constant 0.896774172 : f32
    %33 = vector.broadcast %cst_19 : f32 to vector<64x32xf32>
    %34 = arith.mulf %33, %32 : vector<64x32xf32>
    %35 = arith.addf %28, %34 : vector<64x32xf32>
    %cst_20 = arith.constant dense<0.000000e+00> : vector<64xf32>
    %36 = vector.multi_reduction <add>, %35, %cst_20 [1] : vector<64x32xf32> to vector<64xf32>
    %37 = vector.shape_cast %36 : vector<64xf32> to vector<64x1xf32>
    %38 = arith.addf %26, %37 : vector<64x1xf32>
    %c0_21 = arith.constant 0 : index
    %c0_22 = arith.constant 0 : index
    %39 = vector.load %arg7[%c0_21, %c0_22] : memref<64x1xf32, #tpu.memory_space<vmem>>, vector<64x1xf32>
    tpu.vector_store %arg7[%c0_21, %c0_22], %38 {strides = array<i32>} : memref<64x1xf32, #tpu.memory_space<vmem>>, vector<64x1xf32>,
    %c0_i32_23 = arith.constant 0 : i32
    %40 = arith.cmpi eq, %arg1, %c0_i32_23 : i32
    %41 = arith.extui %40 : i1 to i32
    %c0_i32_24 = arith.constant 0 : i32
    %42 = arith.cmpi ne, %41, %c0_i32_24 : i32
    scf.if %42 {
      %c0_25 = arith.constant 0 : index
      %c0_26 = arith.constant 0 : index
      %43 = vector.load %arg5[%c0_25, %c0_26] : memref<64x1xf32, #tpu.memory_space<vmem>>, vector<64x1xf32>
      %c0_27 = arith.constant 0 : index
      %c0_28 = arith.constant 0 : index
      %44 = vector.load %arg6[%c0_27, %c0_28] : memref<64x1xf32, #tpu.memory_space<vmem>>, vector<64x1xf32>
      %45 = math.log %44 : vector<64x1xf32>
      %46 = arith.addf %43, %45 : vector<64x1xf32>
      %cst_29 = arith.constant 1.000000e+00 : f32
      %47 = vector.broadcast %cst_29 : f32 to vector<64x1xf32>
      %48 = arith.mulf %47, %46 : vector<64x1xf32>
      %c0_30 = arith.constant 0 : index
      %c0_31 = arith.constant 0 : index
      %49 = vector.load %arg7[%c0_30, %c0_31] : memref<64x1xf32, #tpu.memory_space<vmem>>, vector<64x1xf32>
      %50 = arith.subf %48, %49 : vector<64x1xf32>
      %c64_i32 = arith.constant 64 : i32
      %51 = arith.muli %arg0, %c64_i32 : i32
      %52 = tpu.iota {dimensions = array<i32: 0>} : vector<64x1xi32>
      %53 = vector.broadcast %51 : i32 to vector<64x1xi32>
      %54 = arith.addi %53, %52 : vector<64x1xi32>
      %c60_i32 = arith.constant 60 : i32
      %55 = vector.broadcast %c60_i32 : i32 to vector<64x1xi32>
      %56 = arith.cmpi slt, %54, %55 : vector<64x1xi32>
      %cst_32 = arith.constant 0.000000e+00 : f32
      %57 = vector.broadcast %cst_32 : f32 to vector<64x1xf32>
      %58 = arith.select %56, %50, %57 : vector<64x1xi1>, vector<64x1xf32>
      %59 = vector.shape_cast %58 : vector<64x1xf32> to vector<1x64x1xf32>
      %cst_33 = arith.constant dense<0.000000e+00> : vector<1xf32>
      %60 = vector.multi_reduction <add>, %59, %cst_33 [1, 2] : vector<1x64x1xf32> to vector<1xf32>
      %61 = vector.shape_cast %60 : vector<1xf32> to vector<1x1x1xf32>
      %62 = vector.extract %61[0, 0, 0] : f32 from vector<1x1x1xf32>
      %63 = tpu.iota {dimensions = array<i32: 0>} : vector<8x128xi32>
      %64 = tpu.iota {dimensions = array<i32: 1>} : vector<8x128xi32>
      %c0_i32_34 = arith.constant 0 : i32
      %65 = vector.broadcast %c0_i32_34 : i32 to vector<8x128xi32>
      %66 = arith.cmpi eq, %63, %65 : vector<8x128xi32>
      %c0_i32_35 = arith.constant 0 : i32
      %67 = vector.broadcast %c0_i32_35 : i32 to vector<8x128xi32>
      %68 = arith.cmpi eq, %64, %67 : vector<8x128xi32>
      %69 = arith.andi %66, %68 : vector<8x128xi1>
      %cst_36 = arith.constant 0.000000e+00 : f32
      %70 = vector.broadcast %62 : f32 to vector<8x128xf32>
      %71 = vector.broadcast %cst_36 : f32 to vector<8x128xf32>
      %72 = arith.select %69, %70, %71 : vector<8x128xi1>, vector<8x128xf32>
      %c0_37 = arith.constant 0 : index
      %c0_38 = arith.constant 0 : index
      %73 = vector.load %arg4[%c0_37, %c0_38] : memref<8x128xf32, #tpu.memory_space<vmem>>, vector<8x128xf32>
      tpu.vector_store %arg4[%c0_37, %c0_38], %72 {strides = array<i32>} : memref<8x128xf32, #tpu.memory_space<vmem>>, vector<8x128xf32>,
    } else {
    }
    return
  }
  func.func @transform_0(%arg0: i32, %arg1: i32) -> (i32, i32) {
    %c0_i32 = arith.constant 0 : i32
    return %arg0, %arg1 : i32, i32
  }
  func.func @transform_1(%arg0: i32, %arg1: i32) -> (i32, i32) {
    %c0_i32 = arith.constant 0 : i32
    %c0_i32_0 = arith.constant 0 : i32
    return %arg0, %c0_i32 : i32, i32
  }
  func.func @transform_2(%arg0: i32, %arg1: i32) -> (i32, i32) {
    %c0_i32 = arith.constant 0 : i32
    %c0_i32_0 = arith.constant 0 : i32
    return %arg0, %c0_i32 : i32, i32
  }
}

</mosaic_0001>

<llo_original>
// kernel: tpu_custom_call.1
$region0: #{tpu_custom_call.1}
  #allocation0 [shape = 'u32[]', space=smem, size = 0x4, offset = 0x4, fixed_abs, tag = 'smem constant byte address 0x4 - core index']
  #allocation1 [shape = 'u32[72,128]{1,0:T(1,128)}', space=vmem, size = 0x9000, scoped, tag = 'internal scratch']
  #allocation2 [shape = 'f32[64,1]{1,0:T(8,128)}', space=vmem, size = 0x8000, scoped, tag = 'scratch operand']
  #allocation3 [shape = 'f32[64,1]{1,0:T(8,128)}', space=vmem, size = 0x8000, scoped, tag = 'scratch operand']
  #allocation4 [shape = 'f32[64,1]{1,0:T(8,128)}', space=vmem, size = 0x8000, scoped, tag = 'scratch operand']
  %s0 = inlined_call_operand.vmem [shape: f32[60,32], index: 0, kind: input, shape index: {}]
  %s1 = inlined_call_operand.vmem [shape: s32[64,1], index: 1, kind: input, shape index: {}]
  %s2 = inlined_call_operand.hbm [shape: f32[8,128], index: 2, kind: output, shape index: {}]
  %s3 = sld [smem:[#allocation0]]
  $region26: #{tpu_custom_call.1} parent=0
    _
  %s5 = ssub.s32 1, %s3
  %s6 = scalar_select 0, %s5, %s3
  $region1: #{tpu_custom_call.1} parent=0
    #allocation5 [shape = 'u8[4096]{0}', space=vmem, size = 0x1000, scoped, tag = 'output window, operand 0, single buffered']
    #allocation6 [shape = 's32[1]{0}', space=sflag, size = 0x4, scoped, tag = 'scoped memory for tpu_custom_call.1']
    %7 = vsyncpa [#allocation6], 0
    // Predicated region
    $region2: #{tpu_custom_call.1} parent=1 // pred_check
      _
    $region3: #{tpu_custom_call.1} parent=1 // pred_check_branch
      %9 = sbr.rel (0) target = $region5
    $region4: #{tpu_custom_call.1} parent=1 // pred_region
      _
    $region5: #{tpu_custom_call.1} parent=1 // pred_fallthru
      _
    // Predicated region
    $region6: #{tpu_custom_call.1} parent=1 // pred_check
      _
    $region7: #{tpu_custom_call.1} parent=1 // pred_check_branch
      %11 = sbr.rel (0) target = $region9
    $region8: #{tpu_custom_call.1} parent=1 // pred_region
      _
    $region9: #{tpu_custom_call.1} parent=1 // pred_fallthru
      _
    %p12 = scmp.eq.s32.totalorder 0, 0
    // Predicated region
    $region10: #{tpu_custom_call.1} parent=1 // pred_check
      %p13 = pneg %p12
    $region11: #{tpu_custom_call.1} parent=1 // pred_check_branch
      %15 = sbr.rel (%p13) target = $region13
    $region12: #{tpu_custom_call.1} parent=1 // pred_region
      %vm16 = vcmask 7168
      %17 = vst.msk [vmem:[#allocation2] sm:$0xff] %vm16, -inf
      %18 = vst.msk [vmem:[#allocation2 + $0x8] sm:$0xff] %vm16, -inf
      %19 = vst.msk [vmem:[#allocation2 + $0x10] sm:$0xff] %vm16, -inf
      %20 = vst.msk [vmem:[#allocation2 + $0x18] sm:$0xff] %vm16, -inf
      %21 = vst.msk [vmem:[#allocation2 + $0x20] sm:$0xff] %vm16, -inf
      %22 = vst.msk [vmem:[#allocation2 + $0x28] sm:$0xff] %vm16, -inf
      %23 = vst.msk [vmem:[#allocation2 + $0x30] sm:$0xff] %vm16, -inf
      %24 = vst.msk [vmem:[#allocation2 + $0x38] sm:$0xff] %vm16, -inf
      %25 = vst.msk [vmem:[#allocation3] sm:$0xff] %vm16, 0.0
      %26 = vst.msk [vmem:[#allocation3 + $0x8] sm:$0xff] %vm16, 0.0
      %27 = vst.msk [vmem:[#allocation3 + $0x10] sm:$0xff] %vm16, 0.0
      %28 = vst.msk [vmem:[#allocation3 + $0x18] sm:$0xff] %vm16, 0.0
      %29 = vst.msk [vmem:[#allocation3 + $0x20] sm:$0xff] %vm16, 0.0
      %30 = vst.msk [vmem:[#allocation3 + $0x28] sm:$0xff] %vm16, 0.0
      %31 = vst.msk [vmem:[#allocation3 + $0x30] sm:$0xff] %vm16, 0.0
      %32 = vst.msk [vmem:[#allocation3 + $0x38] sm:$0xff] %vm16, 0.0
      %33 = vst.msk [vmem:[#allocation4] sm:$0xff] %vm16, 0.0
      %34 = vst.msk [vmem:[#allocation4 + $0x8] sm:$0xff] %vm16, 0.0
      %35 = vst.msk [vmem:[#allocation4 + $0x10] sm:$0xff] %vm16, 0.0
      %36 = vst.msk [vmem:[#allocation4 + $0x18] sm:$0xff] %vm16, 0.0
      %37 = vst.msk [vmem:[#allocation4 + $0x20] sm:$0xff] %vm16, 0.0
      %38 = vst.msk [vmem:[#allocation4 + $0x28] sm:$0xff] %vm16, 0.0
      %39 = vst.msk [vmem:[#allocation4 + $0x30] sm:$0xff] %vm16, 0.0
      %40 = vst.msk [vmem:[#allocation4 + $0x38] sm:$0xff] %vm16, 0.0
    $region13: #{tpu_custom_call.1} parent=1 // pred_fallthru
      _
    %v41 = vld [vmem:[%s0] sm:$0xff]
    %v42 = vld [vmem:[%s0 + $0x8] sm:$0xff]
    %v43 = vld [vmem:[%s0 + $0x10] sm:$0xff]
    %v44 = vld [vmem:[%s0 + $0x18] sm:$0xff]
    %v45 = vld [vmem:[%s0 + $0x20] sm:$0xff]
    %v46 = vld [vmem:[%s0 + $0x28] sm:$0xff]
    %v47 = vld [vmem:[%s0 + $0x30] sm:$0xff]
    %v48 = vld [vmem:[%s0 + $0x38] sm:$0xff]
    %v49 = vld [vmem:[%s1] sm:$0xff]
    %v50 = vld [vmem:[%s1 + $0x8] sm:$0xff]
    %v51 = vld [vmem:[%s1 + $0x10] sm:$0xff]
    %v52 = vld [vmem:[%s1 + $0x18] sm:$0xff]
    %v53 = vld [vmem:[%s1 + $0x20] sm:$0xff]
    %v54 = vld [vmem:[%s1 + $0x28] sm:$0xff]
    %v55 = vld [vmem:[%s1 + $0x30] sm:$0xff]
    %v56 = vld [vmem:[%s1 + $0x38] sm:$0xff]
    %s57 = smul.u32 0, 32
    %v58 = vlaneseq
    %v59 = vand.u32 %v58, 127
    %v60 = vstv %s57
    %v61 = vadd.s32 %v60, %v59
    %vm62 = vcmask 261120
    %v63 = vsel %vm62, %v41, -inf
    %64 = vmax.xlane.f32.xlu0 %v63
    %v65 = vpop.xlane.xlu0 %64
    %v66 = vsel %vm62, %v42, -inf
    %67 = vmax.xlane.f32.xlu0 %v66
    %v68 = vpop.xlane.xlu0 %67
    %v69 = vsel %vm62, %v43, -inf
    %70 = vmax.xlane.f32.xlu0 %v69
    %v71 = vpop.xlane.xlu0 %70
    %v72 = vsel %vm62, %v44, -inf
    %73 = vmax.xlane.f32.xlu0 %v72
    %v74 = vpop.xlane.xlu0 %73
    %v75 = vsel %vm62, %v45, -inf
    %76 = vmax.xlane.f32.xlu0 %v75
    %v77 = vpop.xlane.xlu0 %76
    %v78 = vsel %vm62, %v46, -inf
    %79 = vmax.xlane.f32.xlu0 %v78
    %v80 = vpop.xlane.xlu0 %79
    %v81 = vsel %vm62, %v47, -inf
    %82 = vmax.xlane.f32.xlu0 %v81
    %v83 = vpop.xlane.xlu0 %82
    %v84 = vsel %vm62, %v48, -inf
    %85 = vmax.xlane.f32.xlu0 %v84
    %v86 = vpop.xlane.xlu0 %85
    %v87 = vld [vmem:[#allocation2] sm:$0xff]
    %v88 = vld [vmem:[#allocation2 + $0x8] sm:$0xff]
    %v89 = vld [vmem:[#allocation2 + $0x10] sm:$0xff]
    %v90 = vld [vmem:[#allocation2 + $0x18] sm:$0xff]
    %v91 = vld [vmem:[#allocation2 + $0x20] sm:$0xff]
    %v92 = vld [vmem:[#allocation2 + $0x28] sm:$0xff]
    %v93 = vld [vmem:[#allocation2 + $0x30] sm:$0xff]
    %v94 = vld [vmem:[#allocation2 + $0x38] sm:$0xff]
    %v95 = vmax.f32 %v87, %v65
    %v96 = vmax.f32 %v88, %v68
    %v97 = vmax.f32 %v89, %v71
    %v98 = vmax.f32 %v90, %v74
    %v99 = vmax.f32 %v91, %v77
    %v100 = vmax.f32 %v92, %v80
    %v101 = vmax.f32 %v93, %v83
    %v102 = vmax.f32 %v94, %v86
    %v103 = vsub.f32 %v87, %v95
    %v104 = vsub.f32 %v88, %v96
    %v105 = vsub.f32 %v89, %v97
    %v106 = vsub.f32 %v90, %v98
    %v107 = vsub.f32 %v91, %v99
    %v108 = vsub.f32 %v92, %v100
    %v109 = vsub.f32 %v93, %v101
    %v110 = vsub.f32 %v94, %v102
    %v111 = vmul.f32 %v103, 1.442695
    %v112 = vpow.pop %v111
    %v113 = vmul.f32 %v104, 1.442695
    %v114 = vpow.pop %v113
    %v115 = vmul.f32 %v105, 1.442695
    %v116 = vpow.pop %v115
    %v117 = vmul.f32 %v106, 1.442695
    %v118 = vpow.pop %v117
    %v119 = vmul.f32 %v107, 1.442695
    %v120 = vpow.pop %v119
    %v121 = vmul.f32 %v108, 1.442695
    %v122 = vpow.pop %v121
    %v123 = vmul.f32 %v109, 1.442695
    %v124 = vpow.pop %v123
    %v125 = vmul.f32 %v110, 1.442695
    %v126 = vpow.pop %v125
    %v127 = vld [vmem:[#allocation3] sm:$0xff]
    %v128 = vld [vmem:[#allocation3 + $0x8] sm:$0xff]
    %v129 = vld [vmem:[#allocation3 + $0x10] sm:$0xff]
    %v130 = vld [vmem:[#allocation3 + $0x18] sm:$0xff]
    %v131 = vld [vmem:[#allocation3 + $0x20] sm:$0xff]
    %v132 = vld [vmem:[#allocation3 + $0x28] sm:$0xff]
    %v133 = vld [vmem:[#allocation3 + $0x30] sm:$0xff]
    %v134 = vld [vmem:[#allocation3 + $0x38] sm:$0xff]
    %v135 = vmul.f32 %v112, %v127
    %v136 = vmul.f32 %v114, %v128
    %v137 = vmul.f32 %v116, %v129
    %v138 = vmul.f32 %v118, %v130
    %v139 = vmul.f32 %v120, %v131
    %v140 = vmul.f32 %v122, %v132
    %v141 = vmul.f32 %v124, %v133
    %v142 = vmul.f32 %v126, %v134
    %144 = vset.pattern.permute.xlu0 0
    %145 = vperm.xlu0 %144, %v95
    %v146 = vpop.permute.xlu0 %145
    %149 = vset.pattern.permute.xlu0 0
    %150 = vperm.xlu0 %149, %v96
    %v151 = vpop.permute.xlu0 %150
    %154 = vset.pattern.permute.xlu0 0
    %155 = vperm.xlu0 %154, %v97
    %v156 = vpop.permute.xlu0 %155
    %159 = vset.pattern.permute.xlu0 0
    %160 = vperm.xlu0 %159, %v98
    %v161 = vpop.permute.xlu0 %160
    %164 = vset.pattern.permute.xlu0 0
    %165 = vperm.xlu0 %164, %v99
    %v166 = vpop.permute.xlu0 %165
    %169 = vset.pattern.permute.xlu0 0
    %170 = vperm.xlu0 %169, %v100
    %v171 = vpop.permute.xlu0 %170
    %174 = vset.pattern.permute.xlu0 0
    %175 = vperm.xlu0 %174, %v101
    %v176 = vpop.permute.xlu0 %175
    %179 = vset.pattern.permute.xlu0 0
    %180 = vperm.xlu0 %179, %v102
    %v181 = vpop.permute.xlu0 %180
    %v183 = vsub.f32 %v41, %v146
    %v184 = vsub.f32 %v42, %v151
    %v185 = vsub.f32 %v43, %v156
    %v186 = vsub.f32 %v44, %v161
    %v187 = vsub.f32 %v45, %v166
    %v188 = vsub.f32 %v46, %v171
    %v189 = vsub.f32 %v47, %v176
    %v190 = vsub.f32 %v48, %v181
    %v191 = vmul.f32 %v183, 1.442695
    %v192 = vpow.pop %v191
    %v193 = vmul.f32 %v184, 1.442695
    %v194 = vpow.pop %v193
    %v195 = vmul.f32 %v185, 1.442695
    %v196 = vpow.pop %v195
    %v197 = vmul.f32 %v186, 1.442695
    %v198 = vpow.pop %v197
    %v199 = vmul.f32 %v187, 1.442695
    %v200 = vpow.pop %v199
    %v201 = vmul.f32 %v188, 1.442695
    %v202 = vpow.pop %v201
    %v203 = vmul.f32 %v189, 1.442695
    %v204 = vpow.pop %v203
    %v205 = vmul.f32 %v190, 1.442695
    %v206 = vpow.pop %v205
    %v207 = vsel %vm62, %v192, 0.0
    %208 = vadd.xlane.f32.xlu0 %v207
    %v209 = vpop.xlane.xlu0 %208
    %v210 = vsel %vm62, %v194, 0.0
    %211 = vadd.xlane.f32.xlu0 %v210
    %v212 = vpop.xlane.xlu0 %211
    %v213 = vsel %vm62, %v196, 0.0
    %214 = vadd.xlane.f32.xlu0 %v213
    %v215 = vpop.xlane.xlu0 %214
    %v216 = vsel %vm62, %v198, 0.0
    %217 = vadd.xlane.f32.xlu0 %v216
    %v218 = vpop.xlane.xlu0 %217
    %v219 = vsel %vm62, %v200, 0.0
    %220 = vadd.xlane.f32.xlu0 %v219
    %v221 = vpop.xlane.xlu0 %220
    %v222 = vsel %vm62, %v202, 0.0
    %223 = vadd.xlane.f32.xlu0 %v222
    %v224 = vpop.xlane.xlu0 %223
    %v225 = vsel %vm62, %v204, 0.0
    %226 = vadd.xlane.f32.xlu0 %v225
    %v227 = vpop.xlane.xlu0 %226
    %v228 = vsel %vm62, %v206, 0.0
    %229 = vadd.xlane.f32.xlu0 %v228
    %v230 = vpop.xlane.xlu0 %229
    %v231 = vadd.f32 %v135, %v209
    %v232 = vadd.f32 %v136, %v212
    %v233 = vadd.f32 %v137, %v215
    %v234 = vadd.f32 %v138, %v218
    %v235 = vadd.f32 %v139, %v221
    %v236 = vadd.f32 %v140, %v224
    %v237 = vadd.f32 %v141, %v227
    %v238 = vadd.f32 %v142, %v230
    %vm239 = vcmask 7168
    %240 = vst.msk [vmem:[#allocation3] sm:$0xff] %vm239, %v231
    %241 = vst.msk [vmem:[#allocation3 + $0x8] sm:$0xff] %vm239, %v232
    %242 = vst.msk [vmem:[#allocation3 + $0x10] sm:$0xff] %vm239, %v233
    %243 = vst.msk [vmem:[#allocation3 + $0x18] sm:$0xff] %vm239, %v234
    %244 = vst.msk [vmem:[#allocation3 + $0x20] sm:$0xff] %vm239, %v235
    %245 = vst.msk [vmem:[#allocation3 + $0x28] sm:$0xff] %vm239, %v236
    %246 = vst.msk [vmem:[#allocation3 + $0x30] sm:$0xff] %vm239, %v237
    %247 = vst.msk [vmem:[#allocation3 + $0x38] sm:$0xff] %vm239, %v238
    %248 = vst.msk [vmem:[#allocation2] sm:$0xff] %vm239, %v95
    %249 = vst.msk [vmem:[#allocation2 + $0x8] sm:$0xff] %vm239, %v96
    %250 = vst.msk [vmem:[#allocation2 + $0x10] sm:$0xff] %vm239, %v97
    %251 = vst.msk [vmem:[#allocation2 + $0x18] sm:$0xff] %vm239, %v98
    %252 = vst.msk [vmem:[#allocation2 + $0x20] sm:$0xff] %vm239, %v99
    %253 = vst.msk [vmem:[#allocation2 + $0x28] sm:$0xff] %vm239, %v100
    %254 = vst.msk [vmem:[#allocation2 + $0x30] sm:$0xff] %vm239, %v101
    %255 = vst.msk [vmem:[#allocation2 + $0x38] sm:$0xff] %vm239, %v102
    %v256 = vld [vmem:[#allocation4] sm:$0xff]
    %v257 = vld [vmem:[#allocation4 + $0x8] sm:$0xff]
    %v258 = vld [vmem:[#allocation4 + $0x10] sm:$0xff]
    %v259 = vld [vmem:[#allocation4 + $0x18] sm:$0xff]
    %v260 = vld [vmem:[#allocation4 + $0x20] sm:$0xff]
    %v261 = vld [vmem:[#allocation4 + $0x28] sm:$0xff]
    %v262 = vld [vmem:[#allocation4 + $0x30] sm:$0xff]
    %v263 = vld [vmem:[#allocation4 + $0x38] sm:$0xff]
    %v264 = vmul.f32 %v41, 0.0032258064
    %v265 = vmul.f32 %v42, 0.0032258064
    %v266 = vmul.f32 %v43, 0.0032258064
    %v267 = vmul.f32 %v44, 0.0032258064
    %v268 = vmul.f32 %v45, 0.0032258064
    %v269 = vmul.f32 %v46, 0.0032258064
    %v270 = vmul.f32 %v47, 0.0032258064
    %v271 = vmul.f32 %v48, 0.0032258064
    %272 = vset.pattern.permute.xlu0 0
    %273 = vperm.xlu0 %272, %v49
    %v274 = vpop.permute.xlu0 %273
    %275 = vset.pattern.permute.xlu0 0
    %276 = vperm.xlu0 %275, %v50
    %v277 = vpop.permute.xlu0 %276
    %278 = vset.pattern.permute.xlu0 0
    %279 = vperm.xlu0 %278, %v51
    %v280 = vpop.permute.xlu0 %279
    %281 = vset.pattern.permute.xlu0 0
    %282 = vperm.xlu0 %281, %v52
    %v283 = vpop.permute.xlu0 %282
    %284 = vset.pattern.permute.xlu0 0
    %285 = vperm.xlu0 %284, %v53
    %v286 = vpop.permute.xlu0 %285
    %287 = vset.pattern.permute.xlu0 0
    %288 = vperm.xlu0 %287, %v54
    %v289 = vpop.permute.xlu0 %288
    %290 = vset.pattern.permute.xlu0 0
    %291 = vperm.xlu0 %290, %v55
    %v292 = vpop.permute.xlu0 %291
    %293 = vset.pattern.permute.xlu0 0
    %294 = vperm.xlu0 %293, %v56
    %v295 = vpop.permute.xlu0 %294
    %vm296 = vcmp.eq.s32.totalorder %v61, %v274
    %vm297 = vcmp.eq.s32.totalorder %v61, %v277
    %vm298 = vcmp.eq.s32.totalorder %v61, %v280
    %vm299 = vcmp.eq.s32.totalorder %v61, %v283
    %vm300 = vcmp.eq.s32.totalorder %v61, %v286
    %vm301 = vcmp.eq.s32.totalorder %v61, %v289
    %vm302 = vcmp.eq.s32.totalorder %v61, %v292
    %vm303 = vcmp.eq.s32.totalorder %v61, %v295
    %v304 = vsel %vm296, %v41, 0.0
    %v305 = vsel %vm297, %v42, 0.0
    %v306 = vsel %vm298, %v43, 0.0
    %v307 = vsel %vm299, %v44, 0.0
    %v308 = vsel %vm300, %v45, 0.0
    %v309 = vsel %vm301, %v46, 0.0
    %v310 = vsel %vm302, %v47, 0.0
    %v311 = vsel %vm303, %v48, 0.0
    %v312 = vmul.f32 %v304, 0.8967742
    %v313 = vmul.f32 %v305, 0.8967742
    %v314 = vmul.f32 %v306, 0.8967742
    %v315 = vmul.f32 %v307, 0.8967742
    %v316 = vmul.f32 %v308, 0.8967742
    %v317 = vmul.f32 %v309, 0.8967742
    %v318 = vmul.f32 %v310, 0.8967742
    %v319 = vmul.f32 %v311, 0.8967742
    %v320 = vadd.f32 %v264, %v312
    %v321 = vadd.f32 %v265, %v313
    %v322 = vadd.f32 %v266, %v314
    %v323 = vadd.f32 %v267, %v315
    %v324 = vadd.f32 %v268, %v316
    %v325 = vadd.f32 %v269, %v317
    %v326 = vadd.f32 %v270, %v318
    %v327 = vadd.f32 %v271, %v319
    %v328 = vsel %vm62, %v320, 0.0
    %329 = vadd.xlane.f32.xlu0 %v328
    %v330 = vpop.xlane.xlu0 %329
    %v331 = vsel %vm62, %v321, 0.0
    %332 = vadd.xlane.f32.xlu0 %v331
    %v333 = vpop.xlane.xlu0 %332
    %v334 = vsel %vm62, %v322, 0.0
    %335 = vadd.xlane.f32.xlu0 %v334
    %v336 = vpop.xlane.xlu0 %335
    %v337 = vsel %vm62, %v323, 0.0
    %338 = vadd.xlane.f32.xlu0 %v337
    %v339 = vpop.xlane.xlu0 %338
    %v340 = vsel %vm62, %v324, 0.0
    %341 = vadd.xlane.f32.xlu0 %v340
    %v342 = vpop.xlane.xlu0 %341
    %v343 = vsel %vm62, %v325, 0.0
    %344 = vadd.xlane.f32.xlu0 %v343
    %v345 = vpop.xlane.xlu0 %344
    %v346 = vsel %vm62, %v326, 0.0
    %347 = vadd.xlane.f32.xlu0 %v346
    %v348 = vpop.xlane.xlu0 %347
    %v349 = vsel %vm62, %v327, 0.0
    %350 = vadd.xlane.f32.xlu0 %v349
    %v351 = vpop.xlane.xlu0 %350
    %v352 = vadd.f32 %v256, %v330
    %v353 = vadd.f32 %v257, %v333
    %v354 = vadd.f32 %v258, %v336
    %v355 = vadd.f32 %v259, %v339
    %v356 = vadd.f32 %v260, %v342
    %v357 = vadd.f32 %v261, %v345
    %v358 = vadd.f32 %v262, %v348
    %v359 = vadd.f32 %v263, %v351
    %360 = vst.msk [vmem:[#allocation4] sm:$0xff] %vm239, %v352
    %361 = vst.msk [vmem:[#allocation4 + $0x8] sm:$0xff] %vm239, %v353
    %362 = vst.msk [vmem:[#allocation4 + $0x10] sm:$0xff] %vm239, %v354
    %363 = vst.msk [vmem:[#allocation4 + $0x18] sm:$0xff] %vm239, %v355
    %364 = vst.msk [vmem:[#allocation4 + $0x20] sm:$0xff] %vm239, %v356
    %365 = vst.msk [vmem:[#allocation4 + $0x28] sm:$0xff] %vm239, %v357
    %366 = vst.msk [vmem:[#allocation4 + $0x30] sm:$0xff] %vm239, %v358
    %367 = vst.msk [vmem:[#allocation4 + $0x38] sm:$0xff] %vm239, %v359
    // Predicated region
    $region14: #{tpu_custom_call.1} parent=1 // pred_check
      %p368 = pneg %p12
    $region15: #{tpu_custom_call.1} parent=1 // pred_check_branch
      %370 = sbr.rel (%p368) target = $region17
    $region16: #{tpu_custom_call.1} parent=1 // pred_region
      %v371 = vld [vmem:[#allocation2] sm:$0xff]
      %v372 = vld [vmem:[#allocation2 + $0x8] sm:$0xff]
      %v373 = vld [vmem:[#allocation2 + $0x10] sm:$0xff]
      %v374 = vld [vmem:[#allocation2 + $0x18] sm:$0xff]
      %v375 = vld [vmem:[#allocation2 + $0x20] sm:$0xff]
      %v376 = vld [vmem:[#allocation2 + $0x28] sm:$0xff]
      %v377 = vld [vmem:[#allocation2 + $0x30] sm:$0xff]
      %v378 = vld [vmem:[#allocation2 + $0x38] sm:$0xff]
      %v379 = vld [vmem:[#allocation3] sm:$0xff]
      %v380 = vld [vmem:[#allocation3 + $0x8] sm:$0xff]
      %v381 = vld [vmem:[#allocation3 + $0x10] sm:$0xff]
      %v382 = vld [vmem:[#allocation3 + $0x18] sm:$0xff]
      %v383 = vld [vmem:[#allocation3 + $0x20] sm:$0xff]
      %v384 = vld [vmem:[#allocation3 + $0x28] sm:$0xff]
      %v385 = vld [vmem:[#allocation3 + $0x30] sm:$0xff]
      %v386 = vld [vmem:[#allocation3 + $0x38] sm:$0xff]
      %v387 = vlog2.pop %v379
      %v388 = vmul.f32 %v387, 0.6931472
      %v389 = vlog2.pop %v380
      %v390 = vmul.f32 %v389, 0.6931472
      %v391 = vlog2.pop %v381
      %v392 = vmul.f32 %v391, 0.6931472
      %v393 = vlog2.pop %v382
      %v394 = vmul.f32 %v393, 0.6931472
      %v395 = vlog2.pop %v383
      %v396 = vmul.f32 %v395, 0.6931472
      %v397 = vlog2.pop %v384
      %v398 = vmul.f32 %v397, 0.6931472
      %v399 = vlog2.pop %v385
      %v400 = vmul.f32 %v399, 0.6931472
      %v401 = vlog2.pop %v386
      %v402 = vmul.f32 %v401, 0.6931472
      %v403 = vadd.f32 %v371, %v388
      %v404 = vadd.f32 %v372, %v390
      %v405 = vadd.f32 %v373, %v392
      %v406 = vadd.f32 %v374, %v394
      %v407 = vadd.f32 %v375, %v396
      %v408 = vadd.f32 %v376, %v398
      %v409 = vadd.f32 %v377, %v400
      %v410 = vadd.f32 %v378, %v402
      %v411 = vld [vmem:[#allocation4] sm:$0xff]
      %v412 = vld [vmem:[#allocation4 + $0x8] sm:$0xff]
      %v413 = vld [vmem:[#allocation4 + $0x10] sm:$0xff]
      %v414 = vld [vmem:[#allocation4 + $0x18] sm:$0xff]
      %v415 = vld [vmem:[#allocation4 + $0x20] sm:$0xff]
      %v416 = vld [vmem:[#allocation4 + $0x28] sm:$0xff]
      %v417 = vld [vmem:[#allocation4 + $0x30] sm:$0xff]
      %v418 = vld [vmem:[#allocation4 + $0x38] sm:$0xff]
      %v419 = vsub.f32 %v403, %v411
      %v420 = vsub.f32 %v404, %v412
      %v421 = vsub.f32 %v405, %v413
      %v422 = vsub.f32 %v406, %v414
      %v423 = vsub.f32 %v407, %v415
      %v424 = vsub.f32 %v408, %v416
      %v425 = vsub.f32 %v409, %v417
      %v426 = vsub.f32 %v410, %v418
      %s427 = smul.u32 0, 64
      %v428 = vlaneseq
      %v429 = vshrl.u32 %v428, 7
      %v430 = vadd.s32 %v429, 8
      %v431 = vadd.s32 %v429, 16
      %v432 = vadd.s32 %v429, 24
      %v433 = vadd.s32 %v429, 32
      %v434 = vadd.s32 %v429, 40
      %v435 = vadd.s32 %v429, 48
      %v436 = vadd.s32 %v429, 56
      %v437 = vstv %s427
      %v438 = vadd.s32 %v437, %v429
      %v439 = vadd.s32 %v437, %v430
      %v440 = vadd.s32 %v437, %v431
      %v441 = vadd.s32 %v437, %v432
      %v442 = vadd.s32 %v437, %v433
      %v443 = vadd.s32 %v437, %v434
      %v444 = vadd.s32 %v437, %v435
      %v445 = vadd.s32 %v437, %v436
      %vm446 = vcmp.lt.s32.totalorder %v438, 60
      %vm447 = vcmp.lt.s32.totalorder %v439, 60
      %vm448 = vcmp.lt.s32.totalorder %v440, 60
      %vm449 = vcmp.lt.s32.totalorder %v441, 60
      %vm450 = vcmp.lt.s32.totalorder %v442, 60
      %vm451 = vcmp.lt.s32.totalorder %v443, 60
      %vm452 = vcmp.lt.s32.totalorder %v444, 60
      %vm453 = vcmp.lt.s32.totalorder %v445, 60
      %v454 = vsel %vm446, %v419, 0.0
      %v455 = vsel %vm447, %v420, 0.0
      %v456 = vsel %vm448, %v421, 0.0
      %v457 = vsel %vm449, %v422, 0.0
      %v458 = vsel %vm450, %v423, 0.0
      %v459 = vsel %vm451, %v424, 0.0
      %v460 = vsel %vm452, %v425, 0.0
      %v461 = vsel %vm453, %v426, 0.0
      %v462 = vsel %vm239, %v454, 0.0
      %v463 = vsel %vm239, %v455, 0.0
      %v464 = vadd.f32 %v462, %v463
      %v465 = vsel %vm239, %v456, 0.0
      %v466 = vadd.f32 %v464, %v465
      %v467 = vsel %vm239, %v457, 0.0
      %v468 = vadd.f32 %v466, %v467
      %v469 = vsel %vm239, %v458, 0.0
      %v470 = vadd.f32 %v468, %v469
      %v471 = vsel %vm239, %v459, 0.0
      %v472 = vadd.f32 %v470, %v471
      %v473 = vsel %vm239, %v460, 0.0
      %v474 = vadd.f32 %v472, %v473
      %v475 = vsel %vm239, %v461, 0.0
      %v476 = vadd.f32 %v474, %v475
      %477 = vadd.xlane.f32.xlu0 %v476
      %v478 = vpop.xlane.xlu0 %477
      %v479 = vrot.slane %v478, 4
      %v480 = vadd.f32 %v478, %v479
      %v481 = vrot.slane %v480, 2
      %v482 = vadd.f32 %v480, %v481
      %v483 = vrot.slane %v482, 1
      %v484 = vadd.f32 %v482, %v483
      %s485 = vtos %v484
      %vm486 = vcmp.eq.s32.totalorder %v429, 0
      %vm487 = vcmp.eq.s32.totalorder %v59, 0
      %vm488 = vmand %vm486, %vm487
      %v489 = vstv %s485
      %v490 = vsel %vm488, %v489, 0.0
      %491 = vst [vmem:[#allocation5] sm:$0xff] %v490
    $region17: #{tpu_custom_call.1} parent=1 // pred_fallthru
      _
    // Predicated region
    $region18: #{tpu_custom_call.1} parent=1 // pred_check
      _
    $region19: #{tpu_custom_call.1} parent=1 // pred_check_branch
      %493 = sbr.rel (0) target = $region21
    $region20: #{tpu_custom_call.1} parent=1 // pred_region
      %495 = vsyncadd [#allocation6], 0
      %s497 = sshll.u32 [#allocation5], 4
      %s498 = int_to_ptr.vmem [resolvable:$true] %s497
      %s499 = sshll.u32 %s2, 4
      %s500 = int_to_ptr.hbm [resolvable:$true] %s499
      %502 = dma.vmem_to_hbm [thread:$0]  %s498, 128, %s500, [#allocation6]
    $region21: #{tpu_custom_call.1} parent=1 // pred_fallthru
      _
    // Predicated region
    $region22: #{tpu_custom_call.1} parent=1 // pred_check
      _
    $region23: #{tpu_custom_call.1} parent=1 // pred_check_branch
      %504 = sbr.rel (0) target = $region25
    $region24: #{tpu_custom_call.1} parent=1 // pred_region
      %506 = dma.done [#allocation6], 128
    $region25: #{tpu_custom_call.1} parent=1 // pred_fallthru
      _
    %507 = vsyncpa [#allocation6], 1

</llo_original>
